<compile_context>
chip_gen: v7x
topology: tpu7x:2x2x1
jax: 0.10.0
libtpu: 0.0.40
codegen_flags: <defaults>
</compile_context>

<pallas_src>
import functools

import jax
import jax.numpy as jnp
from jax.experimental import pallas as pl
from jax.experimental.pallas import tpu as pltpu

_LANES = 128
_SUBLANES = 8
_TILE = _LANES * _SUBLANES  # 1024 elements = one dense f32 (8,128) vreg tile


def _cdiv(a, b):
    return (a + b - 1) // b


def _largest_divisor_leq(n, cap):
    cap = max(1, min(int(n), int(cap)))
    for c in range(cap, 0, -1):
        if n % c == 0:
            return c
    return 1


def _num_tensorcores():
    # v7x has 2 TensorCores per chip; v5e/v6e have 1. Best-effort detection.
    try:
        kind = jax.devices()[0].device_kind.lower()
        if "v7" in kind:
            return 2
    except Exception:
        pass
    return 1


def _vmem_cap_bytes():
    # Per-generation scoped-VMEM budget: ~3/4 of physical VMEM
    # (~48 MiB on v7x's 64 MiB, ~96 MiB on v5e/v6e's 128 MiB).
    try:
        cap = int(pltpu.get_tpu_info().vmem_capacity_bytes)
        return max(32 << 20, (cap * 3) // 4)
    except Exception:
        return 48 << 20  # safe on every generation


def _iou_partial_kernel(pred_ref, gt_ref, inter_ref, psum_ref, gsum_ref, *, sub):
    # grid = (nb, p, k): nb = batch blocks ("parallel"), p = megacore split
    # ("parallel"), k = reduction over groups of (8,128) tiles ("arbitrary").
    k = pl.program_id(2)

    @pl.when(k == 0)
    def _():
        inter_ref[...] = jnp.zeros_like(inter_ref)
        psum_ref[...] = jnp.zeros_like(psum_ref)
        gsum_ref[...] = jnp.zeros_like(gsum_ref)

    gb = pred_ref.shape[1]          # groups in this block (compile-time)
    n_sub = gb // sub               # sub divides gb by construction
    acc_shape = inter_ref.shape[1:]  # (n_blk, 8, 128)

    def body(s, carry):
        inter, psum, gsum = carry
        off = pl.multiple_of(s * sub, sub)
        x = pred_ref[:, pl.ds(off, sub), :, :].astype(jnp.float32)
        g = gt_ref[:, pl.ds(off, sub), :, :].astype(jnp.float32)
        # sigmoid(x) == 0.5*tanh(0.5*x) + 0.5 : single EUP op per element,
        # mul/add on the (slack) VALU -> kernel stays HBM-bound on v7x.
        p = 0.5 * jnp.tanh(0.5 * x) + 0.5
        # Reduce only over the group axis: pure vreg-aligned VPU adds, no
        # cross-lane/sublane (XLU) work in the hot loop.
        inter = inter + jnp.sum(p * g, axis=1)
        psum = psum + jnp.sum(p, axis=1)
        gsum = gsum + jnp.sum(g, axis=1)
        return inter, psum, gsum

    zero = jnp.zeros(acc_shape, jnp.float32)
    inter, psum, gsum = jax.lax.fori_loop(0, n_sub, body, (zero, zero, zero))

    # Lane-dense (1, n_blk, 8, 128) accumulators stay resident in VMEM across
    # the reduction axis (output block index constant in k).
    inter_ref[...] += inter[None]
    psum_ref[...] += psum[None]
    gsum_ref[...] += gsum[None]


def iou_loss(pred, gt, smooth=1e-10, *,
             target_block_bytes=None,
             min_run_bytes=512 * 1024,
             num_parallel=None):
    """IoU loss for NCHW `pred` (logits) and `gt`.  Returns a scalar f32."""
    assert pred.shape == gt.shape and pred.ndim == 4
    n = int(pred.shape[0])
    d = int(pred.shape[1] * pred.shape[2] * pred.shape[3])
    itemsize = jnp.dtype(pred.dtype).itemsize
    tile_bytes = _TILE * itemsize

    vmem_cap = _vmem_cap_bytes()
    if target_block_bytes is None:
        # ~4 MiB / input / step when VMEM is small (v7x), ~8 MiB on v5e/v6e.
        target_block_bytes = (4 << 20) if vmem_cap <= (48 << 20) else (8 << 20)

    g = _cdiv(d, _TILE)  # (8,128)-tile groups covering the flattened sample

    # ---- batch blocking: only pack several samples per block when D is small
    desired_nblk = max(1, target_block_bytes // max(g * tile_bytes, 1))
    n_blk = _largest_divisor_leq(n, min(n, _SUBLANES, desired_nblk))
    nb = n // n_blk

    # ---- megacore split: only on 2-TensorCore chips with enough work -------
    if num_parallel is None:
        num_parallel = 2 if (_num_tensorcores() >= 2 and g >= 2) else 1
    num_parallel = max(1, min(int(num_parallel), g))
    g_half = _cdiv(g, num_parallel)

    # ---- reduction block size, bounded by the per-generation VMEM budget ----
    acc_block_bytes = 3 * 2 * n_blk * _TILE * 4          # 3 f32 acc blocks, 2 buffers
    headroom = 4 << 20                                   # temporaries + internal scratch
    input_budget = max(tile_bytes, vmem_cap - acc_block_bytes - headroom)
    gb_vmem = max(1, input_budget // (2 * 2 * n_blk * tile_bytes))  # 2 inputs x 2 buffers
    gb_target = _cdiv(target_block_bytes, n_blk * tile_bytes)
    gb_run = _cdiv(min_run_bytes, tile_bytes)            # keep per-sample DMA runs long
    gb_hi = max(1, min(max(gb_target, gb_run), gb_vmem, g_half))
    steps = _cdiv(g_half, gb_hi)
    gb = _cdiv(g_half, steps)                            # balanced -> minimal rounding pad

    g_total = num_parallel * steps * gb
    d_pad = g_total * _TILE

    pred2 = pred.reshape(n, d)
    gt2 = gt.reshape(n, d)
    if d_pad > d:
        # Only when D is ragged (or chunk rounding kicks in); the aligned
        # common case (D % 1024 == 0, balanced chunks) is zero-copy.  Pad pred
        # with a huge negative (sigmoid -> exactly 0) and gt with 0 so padded
        # lanes contribute nothing to intersection / pred-sum / gt-sum.
        # TODO(synk): mask the tail tile in-kernel (scalar-prefetched valid
        # length) to avoid this whole-tensor pad copy for ragged D.
        if jnp.issubdtype(pred2.dtype, jnp.floating):
            neg = float(jnp.finfo(pred2.dtype).min)
        else:
            neg = -1e9
        pred2 = jnp.pad(pred2, ((0, 0), (0, d_pad - d)), constant_values=neg)
        gt2 = jnp.pad(gt2, ((0, 0), (0, d_pad - d)), constant_values=0)

    # Free reshape (splits only the trailing contiguous axis).
    pred3 = pred2.reshape(n, g_total, _SUBLANES, _LANES)
    gt3 = gt2.reshape(n, g_total, _SUBLANES, _LANES)

    # Sub-chunk size for the in-kernel fori_loop: bounds the f32 temporaries
    # (sigmoid / upcast / product) to a few vregs regardless of gb.
    sub = _largest_divisor_leq(gb, max(1, _SUBLANES // n_blk))

    block_in_bytes = n_blk * gb * tile_bytes
    vmem_need = 2 * 2 * block_in_bytes + acc_block_bytes + headroom
    vmem_limit = int(min(vmem_cap, max(32 << 20, vmem_need)))

    def in_map(bi, p, k):
        return (bi, p * steps + k, 0, 0)

    def out_map(bi, p, k):
        return (p, bi, 0, 0)

    acc_shape = jax.ShapeDtypeStruct(
        (num_parallel, n, _SUBLANES, _LANES), jnp.float32
    )
    out_block = pl.BlockSpec((1, n_blk, _SUBLANES, _LANES), out_map)

    cost = pl.CostEstimate(
        flops=6 * n * d_pad,
        transcendentals=n * d_pad,
        bytes_accessed=2 * n * d_pad * itemsize + 3 * num_parallel * n * _TILE * 4,
    )

    inter_p, psum_p, gsum_p = pl.pallas_call(
        functools.partial(_iou_partial_kernel, sub=sub),
        out_shape=(acc_shape, acc_shape, acc_shape),
        grid_spec=pltpu.PrefetchScalarGridSpec(
            num_scalar_prefetch=0,
            grid=(nb, num_parallel, steps),
            in_specs=[
                pl.BlockSpec((n_blk, gb, _SUBLANES, _LANES), in_map),
                pl.BlockSpec((n_blk, gb, _SUBLANES, _LANES), in_map),
            ],
            out_specs=[out_block, out_block, out_block],
        ),
        compiler_params=pltpu.CompilerParams(
            # TODO(synk): on v7x, verify the middle ("parallel") axis actually
            # shards across both TensorCores; if not, switch to pltpu.CORE_PARALLEL.
            dimension_semantics=(pltpu.PARALLEL, pltpu.PARALLEL, pltpu.ARBITRARY),
            vmem_limit_bytes=vmem_limit,
        ),
        cost_estimate=cost,
    )(pred3, gt3)

    # Tiny finalize (num_parallel * N * 1024 elems) in plain JAX: the single
    # cross-lane/sublane reduce, per-sample IoU, and the scalar mean.
    inter = jnp.sum(inter_p, axis=(0, 2, 3))                         # (N,)
    union = jnp.sum(psum_p, axis=(0, 2, 3)) + jnp.sum(gsum_p, axis=(0, 2, 3))
    iou = (inter + smooth) / (union + smooth)
    return (1.0 - jnp.mean(iou)).astype(jnp.float32)


def iou_loss_ref(pred, gt, smooth=1e-10):
    p = jax.nn.sigmoid(pred.astype(jnp.float32))
    g = gt.astype(jnp.float32)
    inter = jnp.sum(p * g, axis=(1, 2, 3))
    union = jnp.sum(p, axis=(1, 2, 3)) + jnp.sum(g, axis=(1, 2, 3))
    iou = (inter + smooth) / (union + smooth)
    return 1.0 - jnp.mean(iou)


if __name__ == "__main__":
    key = jax.random.PRNGKey(0)

    # 1) Main case: N=2, C=4, H=W=16 (D=1024 -> exactly one (8,128) tile group,
    #    zero-copy path, single grid step).
    k1, k2 = jax.random.split(key)
    pred = jax.random.normal(k1, (2, 4, 16, 16), dtype=jnp.float32)
    gt = (jax.random.uniform(k2, (2, 4, 16, 16)) > 0.5).astype(jnp.float32)
    loss = iou_loss(pred, gt)
    jax.block_until_ready(loss)
    ref = iou_loss_ref(pred, gt)
    assert jnp.allclose(loss, ref, atol=1e-5, rtol=1e-5), (loss, ref)

    # 2) Ragged D (3*17*19 = 969 not a multiple of 1024): tail-padding path.
    k3, k4 = jax.random.split(k2)
    pred_b = jax.random.normal(k3, (2, 3, 17, 19), dtype=jnp.float32)
    gt_b = (jax.random.uniform(k4, (2, 3, 17, 19)) > 0.5).astype(jnp.float32)
    loss_b = iou_loss(pred_b, gt_b)
    jax.block_until_ready(loss_b)
    ref_b = iou_loss_ref(pred_b, gt_b)
    assert jnp.allclose(loss_b, ref_b, atol=1e-5, rtol=1e-5), (loss_b, ref_b)

    # 3) Multi-step reduction + batch-block grid axis + in-kernel sub-loop:
    #    small block targets force grid (nb=2, p, steps>=2) with n_sub > 1.
    k5, k6 = jax.random.split(k4)
    pred_c = jax.random.normal(k5, (2, 4, 128, 128), dtype=jnp.float32)
    gt_c = (jax.random.uniform(k6, (2, 4, 128, 128)) > 0.5).astype(jnp.float32)
    loss_c = iou_loss(pred_c, gt_c, target_block_bytes=128 * 1024,
                      min_run_bytes=128 * 1024)
    jax.block_until_ready(loss_c)
    ref_c = iou_loss_ref(pred_c, gt_c)
    assert jnp.allclose(loss_c, ref_c, atol=1e-5, rtol=1e-5), (loss_c, ref_c)

    print("KERNEL_OK")
</pallas_src>

<mosaic_0001>
module attributes {stable_mosaic.version = 11 : i64} {
  func.func @_iou_partial_kernel(%arg0: i32, %arg1: i32, %arg2: i32, %arg3: memref<2x1x8x128xf32, #tpu.memory_space<vmem>>, %arg4: memref<2x1x8x128xf32, #tpu.memory_space<vmem>>, %arg5: memref<1x2x8x128xf32, #tpu.memory_space<vmem>>, %arg6: memref<1x2x8x128xf32, #tpu.memory_space<vmem>>, %arg7: memref<1x2x8x128xf32, #tpu.memory_space<vmem>>) attributes {dimension_semantics = [#tpu.dimension_semantics<parallel>, #tpu.dimension_semantics<parallel>, #tpu.dimension_semantics<arbitrary>], iteration_bounds = array<i64: 1, 1, 1>, scalar_prefetch = 0 : i64, scratch_operands = 0 : i64, tpu.core_type = #tpu.core_type<tc>, window_params = [{transform_indices = @transform_0, window_bounds = array<i64: 2, 1, 8, 128>}, {transform_indices = @transform_1, window_bounds = array<i64: 2, 1, 8, 128>}, {transform_indices = @transform_2, window_bounds = array<i64: 1, 2, 8, 128>}, {transform_indices = @transform_3, window_bounds = array<i64: 1, 2, 8, 128>}, {transform_indices = @transform_4, window_bounds = array<i64: 1, 2, 8, 128>}]} {
    %c0_i32 = arith.constant 0 : i32
    %0 = arith.cmpi eq, %arg2, %c0_i32 : i32
    %1 = arith.extui %0 : i1 to i32
    %c0_i32_0 = arith.constant 0 : i32
    %2 = arith.cmpi ne, %1, %c0_i32_0 : i32
    scf.if %2 {
      %cst_38 = arith.constant 0.000000e+00 : f32
      %36 = vector.broadcast %cst_38 : f32 to vector<1x2x8x128xf32>
      %c0_39 = arith.constant 0 : index
      %c0_40 = arith.constant 0 : index
      %c0_41 = arith.constant 0 : index
      %c0_42 = arith.constant 0 : index
      %37 = vector.load %arg5[%c0_39, %c0_40, %c0_41, %c0_42] : memref<1x2x8x128xf32, #tpu.memory_space<vmem>>, vector<1x2x8x128xf32>
      tpu.vector_store %arg5[%c0_39, %c0_40, %c0_41, %c0_42], %36 {strides = array<i32>} : memref<1x2x8x128xf32, #tpu.memory_space<vmem>>, vector<1x2x8x128xf32>,
      %cst_43 = arith.constant 0.000000e+00 : f32
      %38 = vector.broadcast %cst_43 : f32 to vector<1x2x8x128xf32>
      %c0_44 = arith.constant 0 : index
      %c0_45 = arith.constant 0 : index
      %c0_46 = arith.constant 0 : index
      %c0_47 = arith.constant 0 : index
      %39 = vector.load %arg6[%c0_44, %c0_45, %c0_46, %c0_47] : memref<1x2x8x128xf32, #tpu.memory_space<vmem>>, vector<1x2x8x128xf32>
      tpu.vector_store %arg6[%c0_44, %c0_45, %c0_46, %c0_47], %38 {strides = array<i32>} : memref<1x2x8x128xf32, #tpu.memory_space<vmem>>, vector<1x2x8x128xf32>,
      %cst_48 = arith.constant 0.000000e+00 : f32
      %40 = vector.broadcast %cst_48 : f32 to vector<1x2x8x128xf32>
      %c0_49 = arith.constant 0 : index
      %c0_50 = arith.constant 0 : index
      %c0_51 = arith.constant 0 : index
      %c0_52 = arith.constant 0 : index
      %41 = vector.load %arg7[%c0_49, %c0_50, %c0_51, %c0_52] : memref<1x2x8x128xf32, #tpu.memory_space<vmem>>, vector<1x2x8x128xf32>
      tpu.vector_store %arg7[%c0_49, %c0_50, %c0_51, %c0_52], %40 {strides = array<i32>} : memref<1x2x8x128xf32, #tpu.memory_space<vmem>>, vector<1x2x8x128xf32>,
    } else {
    }
    %cst = arith.constant 0.000000e+00 : f32
    %3 = vector.broadcast %cst : f32 to vector<2x8x128xf32>
    %c0_i32_1 = arith.constant 0 : i32
    %c1_i32 = arith.constant 1 : i32
    %4 = arith.muli %c0_i32_1, %c1_i32 : i32
    %5 = tpu.assume_multiple %4, 1 : i32
    %c0 = arith.constant 0 : index
    %6 = arith.index_cast %5 : i32 to index
    %c0_2 = arith.constant 0 : index
    %c0_3 = arith.constant 0 : index
    %7 = vector.load %arg3[%c0, %6, %c0_2, %c0_3] : memref<2x1x8x128xf32, #tpu.memory_space<vmem>>, vector<2x1x8x128xf32>
    %c0_4 = arith.constant 0 : index
    %8 = arith.index_cast %5 : i32 to index
    %c0_5 = arith.constant 0 : index
    %c0_6 = arith.constant 0 : index
    %9 = vector.load %arg4[%c0_4, %8, %c0_5, %c0_6] : memref<2x1x8x128xf32, #tpu.memory_space<vmem>>, vector<2x1x8x128xf32>
    %cst_7 = arith.constant 5.000000e-01 : f32
    %10 = vector.broadcast %cst_7 : f32 to vector<2x1x8x128xf32>
    %11 = arith.mulf %10, %7 : vector<2x1x8x128xf32>
    %12 = math.tanh %11 : vector<2x1x8x128xf32>
    %cst_8 = arith.constant 5.000000e-01 : f32
    %13 = vector.broadcast %cst_8 : f32 to vector<2x1x8x128xf32>
    %14 = arith.mulf %13, %12 : vector<2x1x8x128xf32>
    %cst_9 = arith.constant 5.000000e-01 : f32
    %15 = vector.broadcast %cst_9 : f32 to vector<2x1x8x128xf32>
    %16 = arith.addf %14, %15 : vector<2x1x8x128xf32>
    %17 = arith.mulf %16, %9 : vector<2x1x8x128xf32>
    %cst_10 = arith.constant dense<0.000000e+00> : vector<2x8x128xf32>
    %18 = vector.multi_reduction <add>, %17, %cst_10 [1] : vector<2x1x8x128xf32> to vector<2x8x128xf32>
    %19 = arith.addf %3, %18 : vector<2x8x128xf32>
    %cst_11 = arith.constant dense<0.000000e+00> : vector<2x8x128xf32>
    %20 = vector.multi_reduction <add>, %16, %cst_11 [1] : vector<2x1x8x128xf32> to vector<2x8x128xf32>
    %21 = arith.addf %3, %20 : vector<2x8x128xf32>
    %cst_12 = arith.constant dense<0.000000e+00> : vector<2x8x128xf32>
    %22 = vector.multi_reduction <add>, %9, %cst_12 [1] : vector<2x1x8x128xf32> to vector<2x8x128xf32>
    %23 = arith.addf %3, %22 : vector<2x8x128xf32>
    %c1_i32_13 = arith.constant 1 : i32
    %c0_14 = arith.constant 0 : index
    %c0_15 = arith.constant 0 : index
    %c0_16 = arith.constant 0 : index
    %c0_17 = arith.constant 0 : index
    %24 = vector.load %arg5[%c0_14, %c0_15, %c0_16, %c0_17] : memref<1x2x8x128xf32, #tpu.memory_space<vmem>>, vector<1x2x8x128xf32>
    %25 = vector.shape_cast %19 : vector<2x8x128xf32> to vector<1x2x8x128xf32>
    %26 = arith.addf %24, %25 : vector<1x2x8x128xf32>
    %c0_18 = arith.constant 0 : index
    %c0_19 = arith.constant 0 : index
    %c0_20 = arith.constant 0 : index
    %c0_21 = arith.constant 0 : index
    %27 = vector.load %arg5[%c0_18, %c0_19, %c0_20, %c0_21] : memref<1x2x8x128xf32, #tpu.memory_space<vmem>>, vector<1x2x8x128xf32>
    tpu.vector_store %arg5[%c0_18, %c0_19, %c0_20, %c0_21], %26 {strides = array<i32>} : memref<1x2x8x128xf32, #tpu.memory_space<vmem>>, vector<1x2x8x128xf32>,
    %c0_22 = arith.constant 0 : index
    %c0_23 = arith.constant 0 : index
    %c0_24 = arith.constant 0 : index
    %c0_25 = arith.constant 0 : index
    %28 = vector.load %arg6[%c0_22, %c0_23, %c0_24, %c0_25] : memref<1x2x8x128xf32, #tpu.memory_space<vmem>>, vector<1x2x8x128xf32>
    %29 = vector.shape_cast %21 : vector<2x8x128xf32> to vector<1x2x8x128xf32>
    %30 = arith.addf %28, %29 : vector<1x2x8x128xf32>
    %c0_26 = arith.constant 0 : index
    %c0_27 = arith.constant 0 : index
    %c0_28 = arith.constant 0 : index
    %c0_29 = arith.constant 0 : index
    %31 = vector.load %arg6[%c0_26, %c0_27, %c0_28, %c0_29] : memref<1x2x8x128xf32, #tpu.memory_space<vmem>>, vector<1x2x8x128xf32>
    tpu.vector_store %arg6[%c0_26, %c0_27, %c0_28, %c0_29], %30 {strides = array<i32>} : memref<1x2x8x128xf32, #tpu.memory_space<vmem>>, vector<1x2x8x128xf32>,
    %c0_30 = arith.constant 0 : index
    %c0_31 = arith.constant 0 : index
    %c0_32 = arith.constant 0 : index
    %c0_33 = arith.constant 0 : index
    %32 = vector.load %arg7[%c0_30, %c0_31, %c0_32, %c0_33] : memref<1x2x8x128xf32, #tpu.memory_space<vmem>>, vector<1x2x8x128xf32>
    %33 = vector.shape_cast %23 : vector<2x8x128xf32> to vector<1x2x8x128xf32>
    %34 = arith.addf %32, %33 : vector<1x2x8x128xf32>
    %c0_34 = arith.constant 0 : index
    %c0_35 = arith.constant 0 : index
    %c0_36 = arith.constant 0 : index
    %c0_37 = arith.constant 0 : index
    %35 = vector.load %arg7[%c0_34, %c0_35, %c0_36, %c0_37] : memref<1x2x8x128xf32, #tpu.memory_space<vmem>>, vector<1x2x8x128xf32>
    tpu.vector_store %arg7[%c0_34, %c0_35, %c0_36, %c0_37], %34 {strides = array<i32>} : memref<1x2x8x128xf32, #tpu.memory_space<vmem>>, vector<1x2x8x128xf32>,
    return
  }
  func.func @transform_0(%arg0: i32, %arg1: i32, %arg2: i32) -> (i32, i32, i32, i32) {
    %c1_i32 = arith.constant 1 : i32
    %0 = arith.muli %arg1, %c1_i32 : i32
    %1 = arith.addi %0, %arg2 : i32
    %c0_i32 = arith.constant 0 : i32
    %c0_i32_0 = arith.constant 0 : i32
    %c0_i32_1 = arith.constant 0 : i32
    return %arg0, %1, %c0_i32, %c0_i32_0 : i32, i32, i32, i32
  }
  func.func @transform_1(%arg0: i32, %arg1: i32, %arg2: i32) -> (i32, i32, i32, i32) {
    %c1_i32 = arith.constant 1 : i32
    %0 = arith.muli %arg1, %c1_i32 : i32
    %1 = arith.addi %0, %arg2 : i32
    %c0_i32 = arith.constant 0 : i32
    %c0_i32_0 = arith.constant 0 : i32
    %c0_i32_1 = arith.constant 0 : i32
    return %arg0, %1, %c0_i32, %c0_i32_0 : i32, i32, i32, i32
  }
  func.func @transform_2(%arg0: i32, %arg1: i32, %arg2: i32) -> (i32, i32, i32, i32) {
    %c0_i32 = arith.constant 0 : i32
    %c0_i32_0 = arith.constant 0 : i32
    %c0_i32_1 = arith.constant 0 : i32
    return %arg1, %arg0, %c0_i32, %c0_i32_0 : i32, i32, i32, i32
  }
  func.func @transform_3(%arg0: i32, %arg1: i32, %arg2: i32) -> (i32, i32, i32, i32) {
    %c0_i32 = arith.constant 0 : i32
    %c0_i32_0 = arith.constant 0 : i32
    %c0_i32_1 = arith.constant 0 : i32
    return %arg1, %arg0, %c0_i32, %c0_i32_0 : i32, i32, i32, i32
  }
  func.func @transform_4(%arg0: i32, %arg1: i32, %arg2: i32) -> (i32, i32, i32, i32) {
    %c0_i32 = arith.constant 0 : i32
    %c0_i32_0 = arith.constant 0 : i32
    %c0_i32_1 = arith.constant 0 : i32
    return %arg1, %arg0, %c0_i32, %c0_i32_0 : i32, i32, i32, i32
  }
}

</mosaic_0001>

<llo_original>
// kernel: tpu_custom_call.1
$region0: #{tpu_custom_call.1}
  #allocation0 [shape = 'u32[]', space=smem, size = 0x4, offset = 0x4, fixed_abs, tag = 'smem constant byte address 0x4 - core index']
  #allocation1 [shape = 'u32[144,128]{1,0:T(1,128)}', space=vmem, size = 0x12000, scoped, tag = 'internal scratch']
  %s0 = inlined_call_operand.hbm [shape: f32[2,1,8,128], index: 0, kind: input, shape index: {}]
  %s1 = inlined_call_operand.hbm [shape: f32[2,1,8,128], index: 1, kind: input, shape index: {}]
  %s2 = inlined_call_operand.hbm [shape: f32[1,2,8,128], index: 2, kind: output, shape index: {0}]
  %s3 = inlined_call_operand.hbm [shape: f32[1,2,8,128], index: 3, kind: output, shape index: {1}]
  %s4 = inlined_call_operand.hbm [shape: f32[1,2,8,128], index: 4, kind: output, shape index: {2}]
  %5 = xla_tuple %s2, %s3, %s4
  %s6 = sld [smem:[#allocation0]]
  $region46: #{tpu_custom_call.1} parent=0
    _
  %s8 = ssub.s32 1, %s6
  %s9 = scalar_select 0, %s8, %s6
  $region1: #{tpu_custom_call.1} parent=0
    #allocation2 [shape = 'u8[8192]{0}', space=vmem, size = 0x2000, scoped, tag = 'input window, operand 0, single buffered']
    #allocation3 [shape = 's32[1]{0}', space=sflag, size = 0x4, scoped, tag = 'scoped memory for tpu_custom_call.1']
    #allocation4 [shape = 's32[1]{0}', space=sflag, size = 0x4, scoped, tag = 'scoped memory for tpu_custom_call.1']
    #allocation5 [shape = 'u8[8192]{0}', space=vmem, size = 0x2000, scoped, tag = 'input window, operand 1, single buffered']
    #allocation6 [shape = 's32[1]{0}', space=sflag, size = 0x4, scoped, tag = 'scoped memory for tpu_custom_call.1']
    #allocation7 [shape = 'u8[8192]{0}', space=vmem, size = 0x2000, scoped, tag = 'output window, operand 0, single buffered']
    #allocation8 [shape = 'u8[8192]{0}', space=vmem, size = 0x2000, scoped, tag = 'output window, operand 1, single buffered']
    #allocation9 [shape = 's32[1]{0}', space=sflag, size = 0x4, scoped, tag = 'scoped memory for tpu_custom_call.1']
    #allocation10 [shape = 'u8[8192]{0}', space=vmem, size = 0x2000, scoped, tag = 'output window, operand 2, single buffered']
    %10 = vsyncpa [#allocation3], 0
    %11 = vsyncpa [#allocation6], 0
    %12 = vsyncpa [#allocation4], 0
    %13 = vsyncpa [#allocation9], 0
    // Predicated region
    $region2: #{tpu_custom_call.1} parent=1 // pred_check
      _
    $region3: #{tpu_custom_call.1} parent=1 // pred_check_branch
      %15 = sbr.rel (0) target = $region5
    $region4: #{tpu_custom_call.1} parent=1 // pred_region
      %s16 = sadd.s32 0, 0
      %s18 = ssub.s32 256, 256
      %19 = vsyncadd [#allocation3], %s18
      %s20 = smul.addr %s16, 128
      %s21 = scalar_lea.hbm %s0, %s20
      %s22 = sshll.u32 [#allocation2], 4
      %s23 = int_to_ptr.vmem [resolvable:$true] %s22
      %28 = dma.hbm_to_vmem [thread:$0]  %s21, 256, %s23, [#allocation3], 128, 128, 8
    $region5: #{tpu_custom_call.1} parent=1 // pred_fallthru
      _
    // Predicated region
    $region6: #{tpu_custom_call.1} parent=1 // pred_check
      _
    $region7: #{tpu_custom_call.1} parent=1 // pred_check_branch
      %30 = sbr.rel (0) target = $region9
    $region8: #{tpu_custom_call.1} parent=1 // pred_region
      %s31 = sadd.s32 0, 0
      %s33 = ssub.s32 256, 256
      %34 = vsyncadd [#allocation6], %s33
      %s35 = smul.addr %s31, 128
      %s36 = scalar_lea.hbm %s1, %s35
      %s37 = sshll.u32 [#allocation5], 4
      %s38 = int_to_ptr.vmem [resolvable:$true] %s37
      %43 = dma.hbm_to_vmem [thread:$0]  %s36, 256, %s38, [#allocation6], 128, 128, 8
    $region9: #{tpu_custom_call.1} parent=1 // pred_fallthru
      _
    // Predicated region
    $region10: #{tpu_custom_call.1} parent=1 // pred_check
      _
    $region11: #{tpu_custom_call.1} parent=1 // pred_check_branch
      %45 = sbr.rel (0) target = $region13
    $region12: #{tpu_custom_call.1} parent=1 // pred_region
      %46 = dma.done [#allocation3], 256
    $region13: #{tpu_custom_call.1} parent=1 // pred_fallthru
      _
    // Predicated region
    $region14: #{tpu_custom_call.1} parent=1 // pred_check
      _
    $region15: #{tpu_custom_call.1} parent=1 // pred_check_branch
      %48 = sbr.rel (0) target = $region17
    $region16: #{tpu_custom_call.1} parent=1 // pred_region
      %49 = dma.done [#allocation6], 256
    $region17: #{tpu_custom_call.1} parent=1 // pred_fallthru
      _
    %s50 = sadd.s32 0, 0
    %s51 = sadd.s32 0, 0
    %p52 = scmp.eq.s32.totalorder 0, 0
    // Predicated region
    $region18: #{tpu_custom_call.1} parent=1 // pred_check
      %p53 = pneg %p52
    $region19: #{tpu_custom_call.1} parent=1 // pred_check_branch
      %55 = sbr.rel (%p53) target = $region21
    $region20: #{tpu_custom_call.1} parent=1 // pred_region
      %56 = vst [vmem:[#allocation7] sm:$0xff] 0.0
      %57 = vst [vmem:[#allocation7 + $0x8] sm:$0xff] 0.0
      %58 = vst [vmem:[#allocation8] sm:$0xff] 0.0
      %59 = vst [vmem:[#allocation8 + $0x8] sm:$0xff] 0.0
      %60 = vst [vmem:[#allocation10] sm:$0xff] 0.0
      %61 = vst [vmem:[#allocation10 + $0x8] sm:$0xff] 0.0
    $region21: #{tpu_custom_call.1} parent=1 // pred_fallthru
      _
    %s62 = smul.u32 0, 8
    %s63 = scalar_lea.vmem [#allocation2], %s62
    %v64 = vld [vmem:[%s63] sm:$0xff]
    %v65 = vld [vmem:[%s63 + $0x8] sm:$0xff]
    %s66 = scalar_lea.vmem [#allocation5], %s62
    %v67 = vld [vmem:[%s66] sm:$0xff]
    %v68 = vld [vmem:[%s66 + $0x8] sm:$0xff]
    %v69 = vmul.f32 %v64, 0.5
    %v70 = vmul.f32 %v65, 0.5
    %v71 = vtanh.pop %v69
    %v72 = vtanh.pop %v70
    %v73 = vmul.f32 %v71, 0.5
    %v74 = vmul.f32 %v72, 0.5
    %v75 = vadd.f32 %v73, 0.5
    %v76 = vadd.f32 %v74, 0.5
    %v77 = vmul.f32 %v75, %v67
    %v78 = vmul.f32 %v76, %v68
    %v79 = vadd.f32 %v77, 0.0
    %v80 = vadd.f32 %v78, 0.0
    %v81 = vadd.f32 %v79, 0.0
    %v82 = vadd.f32 %v80, 0.0
    %v83 = vadd.f32 %v75, 0.0
    %v84 = vadd.f32 %v76, 0.0
    %v85 = vadd.f32 %v83, 0.0
    %v86 = vadd.f32 %v84, 0.0
    %v87 = vadd.f32 %v67, 0.0
    %v88 = vadd.f32 %v68, 0.0
    %v89 = vadd.f32 %v87, 0.0
    %v90 = vadd.f32 %v88, 0.0
    %v91 = vld [vmem:[#allocation7] sm:$0xff]
    %v92 = vld [vmem:[#allocation7 + $0x8] sm:$0xff]
    %v93 = vadd.f32 %v91, %v81
    %v94 = vadd.f32 %v92, %v82
    %95 = vst [vmem:[#allocation7] sm:$0xff] %v93
    %96 = vst [vmem:[#allocation7 + $0x8] sm:$0xff] %v94
    %v97 = vld [vmem:[#allocation8] sm:$0xff]
    %v98 = vld [vmem:[#allocation8 + $0x8] sm:$0xff]
    %v99 = vadd.f32 %v97, %v85
    %v100 = vadd.f32 %v98, %v86
    %101 = vst [vmem:[#allocation8] sm:$0xff] %v99
    %102 = vst [vmem:[#allocation8 + $0x8] sm:$0xff] %v100
    %v103 = vld [vmem:[#allocation10] sm:$0xff]
    %v104 = vld [vmem:[#allocation10 + $0x8] sm:$0xff]
    %v105 = vadd.f32 %v103, %v89
    %v106 = vadd.f32 %v104, %v90
    %107 = vst [vmem:[#allocation10] sm:$0xff] %v105
    %108 = vst [vmem:[#allocation10 + $0x8] sm:$0xff] %v106
    // Predicated region
    $region22: #{tpu_custom_call.1} parent=1 // pred_check
      _
    $region23: #{tpu_custom_call.1} parent=1 // pred_check_branch
      %110 = sbr.rel (0) target = $region25
    $region24: #{tpu_custom_call.1} parent=1 // pred_region
      %s112 = ssub.s32 256, 256
      %113 = vsyncadd [#allocation4], %s112
      %s114 = sshll.u32 [#allocation7], 4
      %s115 = int_to_ptr.vmem [resolvable:$true] %s114
      %120 = dma.vmem_to_hbm [thread:$0]  %s115, 256, %s2, [#allocation4], 128, 128, 8
    $region25: #{tpu_custom_call.1} parent=1 // pred_fallthru
      _
    // Predicated region
    $region26: #{tpu_custom_call.1} parent=1 // pred_check
      _
    $region27: #{tpu_custom_call.1} parent=1 // pred_check_branch
      %122 = sbr.rel (0) target = $region29
    $region28: #{tpu_custom_call.1} parent=1 // pred_region
      %s124 = ssub.s32 256, 256
      %125 = vsyncadd [#allocation9], %s124
      %s126 = sshll.u32 [#allocation8], 4
      %s127 = int_to_ptr.vmem [resolvable:$true] %s126
      %132 = dma.vmem_to_hbm [thread:$0]  %s127, 256, %s3, [#allocation9], 128, 128, 8
    $region29: #{tpu_custom_call.1} parent=1 // pred_fallthru
      _
    // Predicated region
    $region30: #{tpu_custom_call.1} parent=1 // pred_check
      _
    $region31: #{tpu_custom_call.1} parent=1 // pred_check_branch
      %134 = sbr.rel (0) target = $region33
    $region32: #{tpu_custom_call.1} parent=1 // pred_region
      %s136 = ssub.s32 256, 256
      %137 = vsyncadd [#allocation9], %s136
      %s138 = sshll.u32 [#allocation10], 4
      %s139 = int_to_ptr.vmem [resolvable:$true] %s138
      %144 = dma.vmem_to_hbm [thread:$0]  %s139, 256, %s4, [#allocation9], 128, 128, 8
    $region33: #{tpu_custom_call.1} parent=1 // pred_fallthru
      _
    // Predicated region
    $region34: #{tpu_custom_call.1} parent=1 // pred_check
      _
    $region35: #{tpu_custom_call.1} parent=1 // pred_check_branch
      %146 = sbr.rel (0) target = $region37
    $region36: #{tpu_custom_call.1} parent=1 // pred_region
      %147 = dma.done [#allocation4], 256
    $region37: #{tpu_custom_call.1} parent=1 // pred_fallthru
      _
    // Predicated region
    $region38: #{tpu_custom_call.1} parent=1 // pred_check
      _
    $region39: #{tpu_custom_call.1} parent=1 // pred_check_branch
      %149 = sbr.rel (0) target = $region41
    $region40: #{tpu_custom_call.1} parent=1 // pred_region
      %150 = dma.done [#allocation9], 256
    $region41: #{tpu_custom_call.1} parent=1 // pred_fallthru
      _
    // Predicated region
    $region42: #{tpu_custom_call.1} parent=1 // pred_check
      _
    $region43: #{tpu_custom_call.1} parent=1 // pred_check_branch
      %152 = sbr.rel (0) target = $region45
    $region44: #{tpu_custom_call.1} parent=1 // pred_region
      %153 = dma.done [#allocation9], 256
    $region45: #{tpu_custom_call.1} parent=1 // pred_fallthru
      _
    %154 = vsyncpa [#allocation3], 1
    %155 = vsyncpa [#allocation6], 1
    %156 = vsyncpa [#allocation4], 1
    %157 = vsyncpa [#allocation9], 1

</llo_original>
